<compile_context>
chip_gen: v6e
topology: v6e:2x2x1
jax: 0.10.0
libtpu: 0.0.40
codegen_flags: <defaults>
</compile_context>

<pallas_src>
import math

import jax
import jax.numpy as jnp
from jax import lax
from jax.experimental import pallas as pl
from jax.experimental.pallas import tpu as pltpu

_NEG_INF_BIAS = -1000000000.0          # matches the PyTorch masked_fill value
_VMEM_LIMIT = 48 * 1024 * 1024         # <= v7x 64 MiB, > v5e/v6e default scoped


def _round_up(x, m):
    return ((x + m - 1) // m) * m


def _tile_and_pad(dim, max_tile):
    """Block size + padded extent obeying the (8,128) rule.

    If `dim` fits inside `max_tile`, use the full dimension (full-dim blocks
    are always legal); otherwise use `max_tile` (a multiple of 8 and 128) and
    pad the dimension up to a multiple of it.
    """
    if dim <= max_tile:
        return dim, dim
    return max_tile, _round_up(dim, max_tile)


# ---------------------------------------------------------------------------
# Tiled linear:  y = x @ w + b   (w stored as (Din, Dout) -> no transpose)
# ---------------------------------------------------------------------------
def _matmul_bias_kernel(x_ref, w_ref, b_ref, o_ref, acc_ref):
    @pl.when(pl.program_id(2) == 0)
    def _():
        acc_ref[...] = jnp.zeros_like(acc_ref)

    acc_ref[...] += jnp.dot(x_ref[...], w_ref[...],
                            preferred_element_type=jnp.float32)

    @pl.when(pl.program_id(2) == pl.num_programs(2) - 1)
    def _():
        o_ref[...] = (acc_ref[...] + b_ref[...]).astype(o_ref.dtype)


def _linear(x2d, w, b, out_dtype):
    """x2d: (M, K); w: (K, N) in (in, out) layout; b: (N,) -> (M, N).

    bf16 MXU operands, f32 accumulation, f32 bias add.
    """
    M, K = x2d.shape
    N = w.shape[1]
    tm, Mp = _tile_and_pad(M, 256)
    tk, Kp = _tile_and_pad(K, 512)
    tn, Np = _tile_and_pad(N, 512)

    x2d = x2d.astype(jnp.bfloat16)
    w = w.astype(jnp.bfloat16)
    b = b.astype(jnp.float32).reshape(1, N)
    if (Mp, Kp) != (M, K):
        x2d = jnp.pad(x2d, ((0, Mp - M), (0, Kp - K)))
    if (Kp, Np) != (K, N):
        w = jnp.pad(w, ((0, Kp - K), (0, Np - N)))
    if Np != N:
        b = jnp.pad(b, ((0, 0), (0, Np - N)))

    grid = (Mp // tm, Np // tn, Kp // tk)
    # TODO(synk): on v5e (lowest HBM BW) consider pipeline_mode=pl.Buffered(3)
    #             on the streamed weight BlockSpec for small-M projection calls.
    out = pl.pallas_call(
        _matmul_bias_kernel,
        out_shape=jax.ShapeDtypeStruct((Mp, Np), out_dtype),
        grid=grid,
        in_specs=[
            pl.BlockSpec((tm, tk), lambda i, j, k: (i, k)),
            pl.BlockSpec((tk, tn), lambda i, j, k: (k, j)),
            pl.BlockSpec((1, tn), lambda i, j, k: (0, j)),
        ],
        out_specs=pl.BlockSpec((tm, tn), lambda i, j, k: (i, j)),
        scratch_shapes=[pltpu.VMEM((tm, tn), jnp.float32)],
        compiler_params=pltpu.CompilerParams(
            dimension_semantics=("parallel", "parallel", "arbitrary"),
            vmem_limit_bytes=_VMEM_LIMIT),
    )(x2d, w, b)
    if (Mp, Np) != (M, N):
        out = out[:M, :N]
    return out


# ---------------------------------------------------------------------------
# Flash attention: one (batch, head) per outer grid step, online softmax
# ---------------------------------------------------------------------------
def _flash_attn_kernel(q_ref, k_ref, v_ref, bias_ref, o_ref,
                       m_sc, l_sc, acc_sc):
    # q_ref: (tq, d_k) bf16 (1/sqrt(d_k) already folded into the Q projection)
    # k_ref, v_ref: (tk, d_k) bf16;  bias_ref: (1, tk) f32 additive mask
    ki = pl.program_id(2)

    @pl.when(ki == 0)
    def _():
        m_sc[...] = jnp.full_like(m_sc, -jnp.inf)
        l_sc[...] = jnp.zeros_like(l_sc)
        acc_sc[...] = jnp.zeros_like(acc_sc)

    # scores = q @ k^T without materializing k.T (contract the d_k dims).
    s = lax.dot_general(q_ref[...], k_ref[...],
                        dimension_numbers=(((1,), (1,)), ((), ())),
                        preferred_element_type=jnp.float32)      # (tq, tk) f32
    s = s + bias_ref[...]                                        # additive mask

    # Online softmax, f32 state.
    # TODO(synk): on v6e/v7x the exp stream could run in bf16; kept f32 so the
    #             identical kernel stays accurate on v5e (no bf16 VPU/EUP).
    m_prev = m_sc[...]
    m_new = jnp.maximum(m_prev, jnp.max(s, axis=-1, keepdims=True))
    alpha = jnp.exp(m_prev - m_new)
    p = jnp.exp(s - m_new)
    l_sc[...] = alpha * l_sc[...] + jnp.sum(p, axis=-1, keepdims=True)
    # Unnormalized PV matmul; 1/l is applied post-PV to the (tq, d_k)
    # accumulator instead of the (tq, tk) weight matrix.
    acc_sc[...] = alpha * acc_sc[...] + jnp.dot(
        p.astype(v_ref.dtype), v_ref[...], preferred_element_type=jnp.float32)
    m_sc[...] = m_new

    @pl.when(ki == pl.num_programs(2) - 1)
    def _():
        o_ref[...] = (acc_sc[...] *
                      pl.reciprocal(l_sc[...], approx=True)).astype(o_ref.dtype)


def _flash_attention(q, k, v, bias, heads):
    """q: (B, Lq, D); k, v: (B, Lk, D) head-interleaved bf16; bias: (B, 1, Lk)."""
    B, Lq, D = q.shape
    Lk = k.shape[1]
    d_k = D // heads
    BH = B * heads

    # Head split: layout plumbing done once by XLA so every kernel step works
    # on lane-aligned 2-D (tile, d_k) blocks (no sub-128-lane head slicing).
    def split_heads(x, Lx):
        return (x.reshape(B, Lx, heads, d_k)
                 .transpose(0, 2, 1, 3)
                 .reshape(BH, Lx, d_k))

    qh, kh, vh = split_heads(q, Lq), split_heads(k, Lk), split_heads(v, Lk)

    tq, Lq_p = _tile_and_pad(Lq, 256)
    tk, Lk_p = _tile_and_pad(Lk, 512)
    if Lq_p != Lq:
        qh = jnp.pad(qh, ((0, 0), (0, Lq_p - Lq), (0, 0)))
    if Lk_p != Lk:
        kh = jnp.pad(kh, ((0, 0), (0, Lk_p - Lk), (0, 0)))
        vh = jnp.pad(vh, ((0, 0), (0, Lk_p - Lk), (0, 0)))
        bias = jnp.pad(bias, ((0, 0), (0, 0), (0, Lk_p - Lk)),
                       constant_values=_NEG_INF_BIAS)

    grid = (BH, Lq_p // tq, Lk_p // tk)
    ctx = pl.pallas_call(
        _flash_attn_kernel,
        out_shape=jax.ShapeDtypeStruct((BH, Lq_p, d_k), q.dtype),
        grid=grid,
        in_specs=[
            pl.BlockSpec((None, tq, d_k), lambda bh, qi, ki: (bh, qi, 0)),
            pl.BlockSpec((None, tk, d_k), lambda bh, qi, ki: (bh, ki, 0)),
            pl.BlockSpec((None, tk, d_k), lambda bh, qi, ki: (bh, ki, 0)),
            pl.BlockSpec((None, 1, tk),
                         lambda bh, qi, ki: (bh // heads, 0, ki)),
        ],
        out_specs=pl.BlockSpec((None, tq, d_k), lambda bh, qi, ki: (bh, qi, 0)),
        scratch_shapes=[
            pltpu.VMEM((tq, 1), jnp.float32),     # running max m
            pltpu.VMEM((tq, 1), jnp.float32),     # running denom l
            pltpu.VMEM((tq, d_k), jnp.float32),   # unnormalized PV accumulator
        ],
        compiler_params=pltpu.CompilerParams(
            dimension_semantics=("parallel", "parallel", "arbitrary"),
            vmem_limit_bytes=_VMEM_LIMIT),
    )(qh, kh, vh, bias)

    ctx = ctx[:, :Lq, :]
    return (ctx.reshape(B, heads, Lq, d_k)
               .transpose(0, 2, 1, 3)
               .reshape(B, Lq, D))


# ---------------------------------------------------------------------------
# Module wrapper
# ---------------------------------------------------------------------------
def init_params(key, d_model):
    """nn.Linear-style init U(-1/sqrt(d), 1/sqrt(d)); weights kept (in, out)."""
    bound = 1.0 / math.sqrt(d_model)
    names = ["q", "k", "v", "o"]
    keys = jax.random.split(key, 2 * len(names))
    params = {}
    for i, n in enumerate(names):
        params[f"w{n}"] = jax.random.uniform(
            keys[2 * i], (d_model, d_model), jnp.float32, -bound, bound)
        params[f"b{n}"] = jax.random.uniform(
            keys[2 * i + 1], (d_model,), jnp.float32, -bound, bound)
    return params


def multi_head_attention(params, query, key, value, mask, heads):
    """Eval-mode forward: query (B, Lq, D); key/value (B, Lk, D); mask (B,1,1,Lk)."""
    B, Lq, D = query.shape
    Lk = key.shape[1]
    d_k = D // heads
    scale = 1.0 / math.sqrt(d_k)

    # Fold 1/sqrt(d_k) into the Q projection (constant on the weights; removes
    # all in-kernel score scaling; MXU result is identical).
    wq, bq = params["wq"] * scale, params["bq"] * scale

    if query is key and key is value:
        # Self-attention fast path: one fused QKV matmul (activation read once,
        # one launch with 3x larger N).
        w_qkv = jnp.concatenate([wq, params["wk"], params["wv"]], axis=1)
        b_qkv = jnp.concatenate([bq, params["bk"], params["bv"]])
        qkv = _linear(query.reshape(B * Lq, D), w_qkv, b_qkv, jnp.bfloat16)
        q = qkv[:, :D].reshape(B, Lq, D)
        k = qkv[:, D:2 * D].reshape(B, Lq, D)
        v = qkv[:, 2 * D:].reshape(B, Lq, D)
    else:
        # Cross-attention keeps three tiled calls (distinct activations).
        q = _linear(query.reshape(B * Lq, D), wq, bq,
                    jnp.bfloat16).reshape(B, Lq, D)
        k = _linear(key.reshape(B * Lk, D), params["wk"], params["bk"],
                    jnp.bfloat16).reshape(B, Lk, D)
        v = _linear(value.reshape(B * Lk, D), params["wv"], params["bv"],
                    jnp.bfloat16).reshape(B, Lk, D)

    # Additive f32 mask bias (masked positions -> -1e9), computed once.
    bias = jnp.where(mask == 0, _NEG_INF_BIAS, 0.0).astype(jnp.float32)
    bias = bias.reshape(B, 1, Lk)

    ctx = _flash_attention(q, k, v, bias, heads)          # (B, Lq, D) bf16

    out = _linear(ctx.reshape(B * Lq, D), params["wo"], params["bo"],
                  jnp.float32)
    return out.reshape(B, Lq, D)


def reference(params, query, key, value, mask, heads):
    """Pure-JAX f32 reference mirroring the PyTorch forward (dropout in eval)."""
    B, Lq, D = query.shape
    Lk = key.shape[1]
    d_k = D // heads

    def lin(x, w, b):                 # w is (in, out)
        return x @ w + b

    def split(x, Lx):
        return x.reshape(B, Lx, heads, d_k).transpose(0, 2, 1, 3)

    q = split(lin(query, params["wq"], params["bq"]), Lq)
    k = split(lin(key, params["wk"], params["bk"]), Lk)
    v = split(lin(value, params["wv"], params["bv"]), Lk)
    scores = jnp.einsum("bhqd,bhkd->bhqk", q, k) / math.sqrt(d_k)
    scores = jnp.where(mask == 0, _NEG_INF_BIAS, scores)
    w = jax.nn.softmax(scores, axis=-1)
    ctx = jnp.einsum("bhqk,bhkd->bhqd", w, v)
    ctx = ctx.transpose(0, 2, 1, 3).reshape(B, Lq, D)
    return lin(ctx, params["wo"], params["bo"])


if __name__ == "__main__":
    B, L, heads, d_model = 2, 8, 4, 32

    root = jax.random.PRNGKey(0)
    kp, kq, kk, kv = jax.random.split(root, 4)
    params = init_params(kp, d_model)

    query = jax.random.normal(kq, (B, L, d_model), jnp.float32)
    key = jax.random.normal(kk, (B, L, d_model), jnp.float32)
    value = jax.random.normal(kv, (B, L, d_model), jnp.float32)

    # mask: (B, 1, 1, L); last two positions of batch 1 are padding.
    mask = jnp.ones((B, 1, 1, L), jnp.int32)
    mask = mask.at[1, 0, 0, -2:].set(0)

    # Cross-attention path (three separate projections).
    out_cross = jax.block_until_ready(
        multi_head_attention(params, query, key, value, mask, heads))
    ref_cross = reference(params, query, key, value, mask, heads)
    assert out_cross.shape == (B, L, d_model)
    # Tolerance covers bf16 MXU operands + the approximate (EUP) reciprocal.
    assert jnp.allclose(out_cross, ref_cross, atol=5e-2, rtol=5e-2), \
        "cross-attention mismatch vs reference"

    # Self-attention fast path (fused QKV projection).
    out_self = jax.block_until_ready(
        multi_head_attention(params, query, query, query, mask, heads))
    ref_self = reference(params, query, query, query, mask, heads)
    assert jnp.allclose(out_self, ref_self, atol=5e-2, rtol=5e-2), \
        "self-attention mismatch vs reference"

    print("KERNEL_OK")
</pallas_src>

<mosaic_0001>
module attributes {stable_mosaic.version = 11 : i64} {
  func.func @_matmul_bias_kernel(%arg0: i32, %arg1: i32, %arg2: i32, %arg3: memref<16x32xbf16, #tpu.memory_space<vmem>>, %arg4: memref<32x32xbf16, #tpu.memory_space<vmem>>, %arg5: memref<1x32xf32, #tpu.memory_space<vmem>>, %arg6: memref<16x32xbf16, #tpu.memory_space<vmem>>, %arg7: memref<16x32xf32, #tpu.memory_space<vmem>>) attributes {dimension_semantics = [#tpu.dimension_semantics<parallel>, #tpu.dimension_semantics<parallel>, #tpu.dimension_semantics<arbitrary>], iteration_bounds = array<i64: 1, 1, 1>, scalar_prefetch = 0 : i64, scratch_operands = 1 : i64, tpu.core_type = #tpu.core_type<tc>, window_params = [{transform_indices = @transform_0, window_bounds = array<i64: 16, 32>}, {transform_indices = @transform_1, window_bounds = array<i64: 32, 32>}, {transform_indices = @transform_2, window_bounds = array<i64: 1, 32>}, {transform_indices = @transform_3, window_bounds = array<i64: 16, 32>}]} {
    %c0_i32 = arith.constant 0 : i32
    %0 = arith.cmpi eq, %arg2, %c0_i32 : i32
    %1 = arith.extui %0 : i1 to i32
    %c0_i32_0 = arith.constant 0 : i32
    %2 = arith.cmpi ne, %1, %c0_i32_0 : i32
    scf.if %2 {
      %cst_10 = arith.constant 0.000000e+00 : f32
      %12 = vector.broadcast %cst_10 : f32 to vector<16x32xf32>
      %c0_11 = arith.constant 0 : index
      %c0_12 = arith.constant 0 : index
      %13 = vector.load %arg7[%c0_11, %c0_12] : memref<16x32xf32, #tpu.memory_space<vmem>>, vector<16x32xf32>
      tpu.vector_store %arg7[%c0_11, %c0_12], %12 {strides = array<i32>} : memref<16x32xf32, #tpu.memory_space<vmem>>, vector<16x32xf32>,
    } else {
    }
    %c0 = arith.constant 0 : index
    %c0_1 = arith.constant 0 : index
    %3 = vector.load %arg7[%c0, %c0_1] : memref<16x32xf32, #tpu.memory_space<vmem>>, vector<16x32xf32>
    %c0_2 = arith.constant 0 : index
    %c0_3 = arith.constant 0 : index
    %4 = vector.load %arg3[%c0_2, %c0_3] : memref<16x32xbf16, #tpu.memory_space<vmem>>, vector<16x32xbf16>
    %c0_4 = arith.constant 0 : index
    %c0_5 = arith.constant 0 : index
    %5 = vector.load %arg4[%c0_4, %c0_5] : memref<32x32xbf16, #tpu.memory_space<vmem>>, vector<32x32xbf16>
    %cst = arith.constant dense<0.000000e+00> : vector<16x32xf32>
    %6 = tpu.matmul %4, %5, %cst {dimension_numbers = #tpu.dot_dimension_numbers<[1], [0], [0], [1], [0, 0, 1, 1], [], []>} : vector<16x32xbf16>, vector<32x32xbf16>, vector<16x32xf32> -> vector<16x32xf32>
    %7 = arith.addf %3, %6 : vector<16x32xf32>
    %c0_6 = arith.constant 0 : index
    %c0_7 = arith.constant 0 : index
    %8 = vector.load %arg7[%c0_6, %c0_7] : memref<16x32xf32, #tpu.memory_space<vmem>>, vector<16x32xf32>
    tpu.vector_store %arg7[%c0_6, %c0_7], %7 {strides = array<i32>} : memref<16x32xf32, #tpu.memory_space<vmem>>, vector<16x32xf32>,
    %c0_i32_8 = arith.constant 0 : i32
    %9 = arith.cmpi eq, %arg2, %c0_i32_8 : i32
    %10 = arith.extui %9 : i1 to i32
    %c0_i32_9 = arith.constant 0 : i32
    %11 = arith.cmpi ne, %10, %c0_i32_9 : i32
    scf.if %11 {
      %c0_10 = arith.constant 0 : index
      %c0_11 = arith.constant 0 : index
      %12 = vector.load %arg7[%c0_10, %c0_11] : memref<16x32xf32, #tpu.memory_space<vmem>>, vector<16x32xf32>
      %c0_12 = arith.constant 0 : index
      %c0_13 = arith.constant 0 : index
      %13 = vector.load %arg5[%c0_12, %c0_13] : memref<1x32xf32, #tpu.memory_space<vmem>>, vector<1x32xf32>
      %14 = vector.broadcast %13 : vector<1x32xf32> to vector<16x32xf32>
      %15 = arith.addf %12, %14 : vector<16x32xf32>
      %16 = arith.truncf %15 : vector<16x32xf32> to vector<16x32xbf16>
      %c0_14 = arith.constant 0 : index
      %c0_15 = arith.constant 0 : index
      %17 = vector.load %arg6[%c0_14, %c0_15] : memref<16x32xbf16, #tpu.memory_space<vmem>>, vector<16x32xbf16>
      tpu.vector_store %arg6[%c0_14, %c0_15], %16 {strides = array<i32>} : memref<16x32xbf16, #tpu.memory_space<vmem>>, vector<16x32xbf16>,
    } else {
    }
    return
  }
  func.func @transform_0(%arg0: i32, %arg1: i32, %arg2: i32) -> (i32, i32) {
    %c0_i32 = arith.constant 0 : i32
    return %arg0, %arg2 : i32, i32
  }
  func.func @transform_1(%arg0: i32, %arg1: i32, %arg2: i32) -> (i32, i32) {
    %c0_i32 = arith.constant 0 : i32
    return %arg2, %arg1 : i32, i32
  }
  func.func @transform_2(%arg0: i32, %arg1: i32, %arg2: i32) -> (i32, i32) {
    %c0_i32 = arith.constant 0 : i32
    %c0_i32_0 = arith.constant 0 : i32
    return %c0_i32, %arg1 : i32, i32
  }
  func.func @transform_3(%arg0: i32, %arg1: i32, %arg2: i32) -> (i32, i32) {
    %c0_i32 = arith.constant 0 : i32
    return %arg0, %arg1 : i32, i32
  }
}

</mosaic_0001>

<llo_original>
// kernel: tpu_custom_call.1
$region0: #{tpu_custom_call.1}
  #allocation0 [shape = 'u32[]', space=smem, size = 0x4, offset = 0x4, fixed_abs, tag = 'smem constant byte address 0x4 - core index']
  #allocation1 [shape = 'u32[144,128]{1,0:T(1,128)}', space=vmem, size = 0x12000, scoped, tag = 'internal scratch']
  #allocation2 [shape = 'f32[16,32]{1,0:T(8,128)}', space=vmem, size = 0x2000, scoped, tag = 'scratch operand']
  %s0 = inlined_call_operand.hbm [shape: bf16[16,32], index: 0, kind: input, shape index: {}]
  %s1 = inlined_call_operand.hbm [shape: bf16[32,32], index: 1, kind: input, shape index: {}]
  %s2 = inlined_call_operand.vmem [shape: f32[1,32], index: 2, kind: input, shape index: {}]
  %s3 = inlined_call_operand.hbm [shape: bf16[16,32], index: 3, kind: output, shape index: {}]
  %s4 = sld [smem:[#allocation0]]
  $region38: #{tpu_custom_call.1} parent=0
    _
  %s6 = ssub.s32 1, %s4
  %s7 = scalar_select 0, %s6, %s4
  $region1: #{tpu_custom_call.1} parent=0
    #allocation3 [shape = 'u8[4096]{0}', space=vmem, size = 0x1000, scoped, tag = 'input window, operand 0, single buffered']
    #allocation4 [shape = 's32[1]{0}', space=sflag, size = 0x4, scoped, tag = 'scoped memory for tpu_custom_call.1']
    #allocation5 [shape = 's32[1]{0}', space=sflag, size = 0x4, scoped, tag = 'scoped memory for tpu_custom_call.1']
    #allocation6 [shape = 'u8[8192]{0}', space=vmem, size = 0x2000, scoped, tag = 'input window, operand 1, single buffered']
    #allocation7 [shape = 's32[1]{0}', space=sflag, size = 0x4, scoped, tag = 'scoped memory for tpu_custom_call.1']
    #allocation8 [shape = 'u8[4096]{0}', space=vmem, size = 0x1000, scoped, tag = 'output window, operand 0, single buffered']
    %8 = vsyncpa [#allocation4], 0
    %9 = vsyncpa [#allocation7], 0
    %10 = vsyncpa [#allocation5], 0
    // Predicated region
    $region2: #{tpu_custom_call.1} parent=1 // pred_check
      _
    $region3: #{tpu_custom_call.1} parent=1 // pred_check_branch
      %12 = sbr.rel (0) target = $region5
    $region4: #{tpu_custom_call.1} parent=1 // pred_region
      %s14 = ssub.s32 128, 128
      %15 = vsyncadd [#allocation4], %s14
      %s16 = sshll.u32 [#allocation3], 4
      %s17 = int_to_ptr.vmem [resolvable:$true] %s16
      %22 = dma.hbm_to_vmem [thread:$0]  %s0, 128, %s17, [#allocation4], 64, 64, 4
    $region5: #{tpu_custom_call.1} parent=1 // pred_fallthru
      _
    // Predicated region
    $region6: #{tpu_custom_call.1} parent=1 // pred_check
      _
    $region7: #{tpu_custom_call.1} parent=1 // pred_check_branch
      %24 = sbr.rel (0) target = $region9
    $region8: #{tpu_custom_call.1} parent=1 // pred_region
      %s26 = ssub.s32 256, 256
      %27 = vsyncadd [#allocation7], %s26
      %s28 = sshll.u32 [#allocation6], 4
      %s29 = int_to_ptr.vmem [resolvable:$true] %s28
      %34 = dma.hbm_to_vmem [thread:$0]  %s1, 256, %s29, [#allocation7], 64, 64, 4
    $region9: #{tpu_custom_call.1} parent=1 // pred_fallthru
      _
    // Predicated region
    $region10: #{tpu_custom_call.1} parent=1 // pred_check
      _
    $region11: #{tpu_custom_call.1} parent=1 // pred_check_branch
      %36 = sbr.rel (0) target = $region13
    $region12: #{tpu_custom_call.1} parent=1 // pred_region
      _
    $region13: #{tpu_custom_call.1} parent=1 // pred_fallthru
      _
    // Predicated region
    $region14: #{tpu_custom_call.1} parent=1 // pred_check
      _
    $region15: #{tpu_custom_call.1} parent=1 // pred_check_branch
      %38 = sbr.rel (0) target = $region17
    $region16: #{tpu_custom_call.1} parent=1 // pred_region
      %39 = dma.done [#allocation4], 128
    $region17: #{tpu_custom_call.1} parent=1 // pred_fallthru
      _
    // Predicated region
    $region18: #{tpu_custom_call.1} parent=1 // pred_check
      _
    $region19: #{tpu_custom_call.1} parent=1 // pred_check_branch
      %41 = sbr.rel (0) target = $region21
    $region20: #{tpu_custom_call.1} parent=1 // pred_region
      %42 = dma.done [#allocation7], 256
    $region21: #{tpu_custom_call.1} parent=1 // pred_fallthru
      _
    %p44 = scmp.eq.s32.totalorder 0, 0
    // Predicated region
    $region22: #{tpu_custom_call.1} parent=1 // pred_check
      %p45 = pneg %p44
    $region23: #{tpu_custom_call.1} parent=1 // pred_check_branch
      %47 = sbr.rel (%p45) target = $region25
    $region24: #{tpu_custom_call.1} parent=1 // pred_region
      %vm48 = vcmask 261120
      %49 = vst.msk [vmem:[#allocation2] sm:$0xff] %vm48, 0.0
      %50 = vst.msk [vmem:[#allocation2 + $0x8] sm:$0xff] %vm48, 0.0
    $region25: #{tpu_custom_call.1} parent=1 // pred_fallthru
      _
    %v51 = vld [vmem:[#allocation2] sm:$0xff]
    %v52 = vld [vmem:[#allocation2 + $0x8] sm:$0xff]
    %v53 = vld [vmem:[#allocation3] sm:$0xf]
    %v54 = vld [vmem:[#allocation3 + $0x4] sm:$0xf]
    %v55 = vld [vmem:[#allocation6] sm:$0xf]
    %v56 = vld [vmem:[#allocation6 + $0x4] sm:$0xf]
    %v57 = vld [vmem:[#allocation6 + $0x8] sm:$0xf]
    %v58 = vld [vmem:[#allocation6 + $0xc] sm:$0xf]
    %v61 = vunpack.c.l.b16 %v53
    %v62 = vunpack.c.l.b16 %v54
    %v63 = vpack.c.b16 %v62, %v61
    %v68 = vunpack.c.l.b16 %v55
    %v69 = vunpack.c.l.b16 %v56
    %v70 = vunpack.c.l.b16 %v57
    %v71 = vunpack.c.l.b16 %v58
    %v72 = vpack.c.b16 %v69, %v68
    %v73 = vpack.c.b16 %v71, %v70
    %vm76 = vcmask 261120
    %v78 = vsel %vm76, %v63, 0
    %80 = vmatprep.subr.bf16.mxu0 0
    %81 = vmatpush1.bf16.msra.mxu0 0
    %82 = vmatprep.subr.bf16.mxu0 0
    %83 = vmatpush1.bf16.msra.mxu0 0
    %84 = vmatprep.subr.bf16.mxu0 0
    %85 = vmatpush1.bf16.msra.mxu0 0
    %86 = vmatprep.subr.bf16.mxu0 0
    %87 = vmatpush1.bf16.msra.mxu0 0
    %88 = vmatprep.subr.bf16.mxu0 0
    %89 = vmatpush1.bf16.msra.mxu0 0
    %90 = vmatprep.subr.bf16.mxu0 0
    %91 = vmatpush1.bf16.msra.mxu0 0
    %92 = vmatprep.subr.bf16.mxu0 0
    %93 = vmatpush1.bf16.msra.mxu0 %v73
    %94 = vmatprep.subr.bf16.mxu0 0
    %95 = vmatpush1.bf16.msra.mxu0 %v72
    %96 = vmatprep.subr.bf16.mxu0 0
    %97 = vmatpush2.bf16.msra.mxu0 0
    %98 = vmatprep.subr.bf16.mxu0 0
    %99 = vmatpush2.bf16.msra.mxu0 0
    %100 = vmatprep.subr.bf16.mxu0 0
    %101 = vmatpush2.bf16.msra.mxu0 0
    %102 = vmatprep.subr.bf16.mxu0 0
    %103 = vmatpush2.bf16.msra.mxu0 0
    %104 = vmatprep.subr.bf16.mxu0 0
    %105 = vmatpush2.bf16.msra.mxu0 0
    %106 = vmatprep.subr.bf16.mxu0 0
    %107 = vmatpush2.bf16.msra.mxu0 0
    %108 = vmatprep.subr.bf16.mxu0 0
    %109 = vmatpush2.bf16.msra.mxu0 0
    %110 = vmatprep.subr.bf16.mxu0 0
    %111 = vmatpush2.bf16.msra.mxu0 0
    %112 = vmatprep.mubr.bf16.mxu0 0
    %113 = vmatmul.mubr.bf16.gmra.mxu0 %v78
    %v114 = vpop.f32.mrf.mxu0
    %v115 = vadd.f32 0.0, %v114
    %v116 = vpop.f32.mrf.mxu0
    %v117 = vpop.f32.mrf.mxu0
    %v118 = vadd.f32 0.0, %v117
    %v119 = vpop.f32.mrf.mxu0
    %120 = vdwg.mxu0
    %v121 = vadd.f32 %v51, %v115
    %v122 = vadd.f32 %v52, %v118
    %123 = vst.msk [vmem:[#allocation2] sm:$0xff] %vm76, %v121
    %124 = vst.msk [vmem:[#allocation2 + $0x8] sm:$0xff] %vm76, %v122
    // Predicated region
    $region26: #{tpu_custom_call.1} parent=1 // pred_check
      %p125 = pneg %p44
    $region27: #{tpu_custom_call.1} parent=1 // pred_check_branch
      %127 = sbr.rel (%p125) target = $region29
    $region28: #{tpu_custom_call.1} parent=1 // pred_region
      %v128 = vld [vmem:[#allocation2] sm:$0xff]
      %v129 = vld [vmem:[#allocation2 + $0x8] sm:$0xff]
      %v130 = vld [vmem:[%s2] sm:$0x1]
      %v132 = vlaneseq
      %v133 = vshrl.u32 %v132, 7
      %v134 = vsub.s32 0, %v133
      %v135 = vrot.slane %v130, %v134
      %v137 = vadd.f32 %v128, %v135
      %v138 = vadd.f32 %v129, %v135
      %v139 = vpack.c.bf16 %v138, %v137
      %v141 = vunpack.c.l.b16 %v139
      %v142 = vunpack.c.h.b16 %v139
      %v143 = vpack.c.b16 %v141, %v141
      %v144 = vpack.c.b16 %v142, %v142
      %vm147 = vcmask 257024
      %148 = vst.msk [vmem:[#allocation8] sm:$0xf] %vm147, %v143
      %149 = vst.msk [vmem:[#allocation8 + $0x4] sm:$0xf] %vm147, %v144
    $region29: #{tpu_custom_call.1} parent=1 // pred_fallthru
      _
    // Predicated region
    $region30: #{tpu_custom_call.1} parent=1 // pred_check
      _
    $region31: #{tpu_custom_call.1} parent=1 // pred_check_branch
      %151 = sbr.rel (0) target = $region33
    $region32: #{tpu_custom_call.1} parent=1 // pred_region
      %s153 = ssub.s32 128, 128
      %154 = vsyncadd [#allocation5], %s153
      %s155 = sshll.u32 [#allocation8], 4
      %s156 = int_to_ptr.vmem [resolvable:$true] %s155
      %161 = dma.vmem_to_hbm [thread:$0]  %s156, 128, %s3, [#allocation5], 64, 64, 4
    $region33: #{tpu_custom_call.1} parent=1 // pred_fallthru
      _
    // Predicated region
    $region34: #{tpu_custom_call.1} parent=1 // pred_check
      _
    $region35: #{tpu_custom_call.1} parent=1 // pred_check_branch
      %163 = sbr.rel (0) target = $region37
    $region36: #{tpu_custom_call.1} parent=1 // pred_region
      %164 = dma.done [#allocation5], 128
    $region37: #{tpu_custom_call.1} parent=1 // pred_fallthru
      _
    %165 = vsyncpa [#allocation4], 1
    %166 = vsyncpa [#allocation7], 1
    %167 = vsyncpa [#allocation5], 1

</llo_original>
